<compile_context>
chip_gen: v5e
topology: v5e:2x2
jax: 0.10.0
libtpu: 0.0.40
codegen_flags: <defaults>
</compile_context>

<pallas_src>
import jax
import jax.numpy as jnp
from jax import lax
from jax.experimental import pallas as pl
from jax.experimental.pallas import tpu as pltpu

_LANES = 128
_PART_SUBLANES = 8


def _make_kernel(multi_task: bool, has_weights: bool, B_total: int):
    """Builds a kernel specialized for the static (multi_task, has_weights) config."""

    def kernel(*args):
        it = iter(args)
        logits_ref = next(it)
        soft_logits_ref = next(it) if multi_task else None
        soft_labels_ref = next(it)
        labels_ref = next(it) if multi_task else None
        cw_ref = next(it) if has_weights else None
        out_ref = next(it)

        i = pl.program_id(0)
        TB, C = soft_labels_ref.shape

        # Valid-row mask for the ragged last tile.  Keep this as a lane select
        # (jnp.where): garbage tail rows can produce NaN through exp/log and
        # arithmetic masking (x * 0) would propagate it into the partial sums.
        row_ids = i * TB + lax.broadcasted_iota(jnp.int32, (TB, 1), 0)
        row_valid = row_ids < B_total                                 # (TB, 1)

        def log_softmax(x):
            m = jnp.max(x, axis=-1, keepdims=True)
            s = x - m
            return s - jnp.log(jnp.sum(jnp.exp(s), axis=-1, keepdims=True))

        soft_labels = soft_labels_ref[...].astype(jnp.float32)        # (TB, C)

        # preds used inside the KL term (soft_logits in the multi-task branch).
        if multi_task:
            preds = log_softmax(soft_logits_ref[...].astype(jnp.float32))
        else:
            preds = log_softmax(logits_ref[...].astype(jnp.float32))

        # F.kl_div(preds, target, log_target=False) pointwise:
        #   target * (log(target) - preds), defined as 0 where target == 0.
        pos = soft_labels > 0.0
        safe_t = jnp.where(pos, soft_labels, 1.0)
        kl = jnp.where(pos, soft_labels * (jnp.log(safe_t) - preds), 0.0)

        iota_c = None
        cw = None
        if has_weights:
            cw = cw_ref[...].astype(jnp.float32)                      # (1, C)
            iota_c = lax.broadcasted_iota(jnp.int32, (TB, C), 1)
            # argmax(soft_labels) with first-max tie-breaking (matches
            # torch.max), then gather the class weight with a lane select
            # instead of an f32 one-hot + multiply (VPU-op trimming).
            max_val = jnp.max(soft_labels, axis=-1, keepdims=True)
            hard = jnp.min(jnp.where(soft_labels == max_val, iota_c, C),
                           axis=-1, keepdims=True)                    # (TB, 1)
            w_row = jnp.sum(jnp.where(iota_c == hard, cw, 0.0),
                            axis=-1, keepdims=True)                   # (TB, 1)
            kl_rows = w_row * jnp.sum(kl, axis=-1, keepdims=True)     # (TB, 1)
        else:
            kl_rows = jnp.sum(kl, axis=-1, keepdims=True)             # (TB, 1)

        kl_part = jnp.sum(jnp.where(row_valid, kl_rows, 0.0),
                          axis=0, keepdims=True)                      # (1, 1)

        # Lane-dense per-tile partials: lane 0 = kl, 1 = ce num, 2 = weight den.
        lane = lax.broadcasted_iota(jnp.int32, (_PART_SUBLANES, _LANES), 1)
        vals = jnp.where(lane == 0, kl_part, 0.0)

        if multi_task:
            # Cross entropy on `logits` vs integer `labels`.
            logp = log_softmax(logits_ref[...].astype(jnp.float32))
            labels = labels_ref[...]                                  # (TB, 1)
            if iota_c is None:
                iota_c = lax.broadcasted_iota(jnp.int32, (TB, C), 1)
            sel = iota_c == labels                                    # (TB, C)
            nll = -jnp.sum(jnp.where(sel, logp, 0.0),
                           axis=-1, keepdims=True)                    # (TB, 1)
            nll = jnp.where(row_valid, nll, 0.0)
            if has_weights:
                w_lab = jnp.sum(jnp.where(sel, cw, 0.0),
                                axis=-1, keepdims=True)               # (TB, 1)
                w_lab = jnp.where(row_valid, w_lab, 0.0)
                ce_part = jnp.sum(w_lab * nll, axis=0, keepdims=True)
                w_part = jnp.sum(w_lab, axis=0, keepdims=True)
                vals = (vals
                        + jnp.where(lane == 1, ce_part, 0.0)
                        + jnp.where(lane == 2, w_part, 0.0))
            else:
                ce_part = jnp.sum(nll, axis=0, keepdims=True)
                vals = vals + jnp.where(lane == 1, ce_part, 0.0)

        out_ref[0] = vals

    return kernel


def _pick_tile_rows(B, C, streamed_itemsizes, tile_rows=None):
    """Generation-aware tile-row & vmem_limit selection."""
    try:
        phys_vmem = int(pltpu.get_tpu_info().vmem_capacity_bytes)
    except Exception:                      # interpret mode / older jax
        phys_vmem = 64 << 20               # assume tightest generation (v7x)

    # Per tile-row VMEM cost:
    #   * each streamed (TB, C) input: 2 double-buffered DMA blocks, native dtype
    #   * ~6 f32 (TB, C) temporaries for the widened log-softmax / KL math
    per_row = sum(2 * C * sz for sz in streamed_itemsizes) + 6 * C * 4
    budget = min(48 << 20, int(0.6 * phys_vmem))

    if tile_rows is None:
        tb = budget // max(1, per_row)
        # Round to the packed sublane tile of the narrowest streamed dtype:
        # 8 rows for f32, 16 for bf16, 32 for int8/fp8.
        sub = max(8, 32 // max(1, min(streamed_itemsizes)))
        tb = max(sub, (tb // sub) * sub)
        tb = min(tb, 32768)
        if B <= tb:
            tb = B        # single block: block dim == full dim is always legal
    else:
        tb = int(tile_rows)

    vmem_limit = int(min(0.9 * phys_vmem,
                         max(32 << 20, per_row * min(tb, B) + (4 << 20))))
    return tb, vmem_limit


def kl_loss(logits, soft_labels, multi_task,
            soft_logits=None, labels=None, class_weights=None,
            tile_rows=None):
    """JAX/Pallas equivalent of KLLoss.forward."""
    B, C = logits.shape
    multi_task = bool(multi_task)
    has_weights = class_weights is not None

    streamed = [logits, soft_labels] + ([soft_logits] if multi_task else [])
    itemsizes = [a.dtype.itemsize for a in streamed]
    TB, vmem_limit = _pick_tile_rows(B, C, itemsizes, tile_rows)
    num_tiles = (B + TB - 1) // TB

    bc_spec = pl.BlockSpec((TB, C), lambda i: (i, 0))

    in_specs = [bc_spec]
    args = [logits]
    if multi_task:
        assert soft_logits is not None and labels is not None
        in_specs.append(bc_spec)
        args.append(soft_logits)
    in_specs.append(bc_spec)
    args.append(soft_labels)
    if multi_task:
        in_specs.append(pl.BlockSpec((TB, 1), lambda i: (i, 0)))
        args.append(labels.astype(jnp.int32).reshape(B, 1))
    if has_weights:
        in_specs.append(pl.BlockSpec((1, C), lambda i: (0, 0)))
        args.append(class_weights.reshape(1, C))

    bytes_accessed = sum(int(a.size) * a.dtype.itemsize for a in args)
    bytes_accessed += num_tiles * _PART_SUBLANES * _LANES * 4
    cost = pl.CostEstimate(
        flops=(10 if multi_task else 6) * B * C,
        transcendentals=(3 if multi_task else 2) * B * C,
        bytes_accessed=bytes_accessed)

    parts = pl.pallas_call(
        _make_kernel(multi_task, has_weights, B),
        out_shape=jax.ShapeDtypeStruct((num_tiles, _PART_SUBLANES, _LANES),
                                       jnp.float32),
        grid_spec=pltpu.PrefetchScalarGridSpec(
            num_scalar_prefetch=0,
            grid=(num_tiles,),
            in_specs=in_specs,
            out_specs=pl.BlockSpec((1, _PART_SUBLANES, _LANES),
                                   lambda i: (i, 0, 0))),
        compiler_params=pltpu.CompilerParams(
            dimension_semantics=("parallel",),
            vmem_limit_bytes=vmem_limit),
        cost_estimate=cost,
    )(*args)

    # Tiny tree-reduction of the per-tile partials (lane 0 / 1 / 2 of sublane 0).
    kl_sum = jnp.sum(parts[:, 0, 0])
    b_f = jnp.float32(B)
    if multi_task:
        ce_sum = jnp.sum(parts[:, 0, 1])
        if has_weights:
            ce = ce_sum / jnp.sum(parts[:, 0, 2])
        else:
            ce = ce_sum / b_f
        return ce + kl_sum / b_f
    return kl_sum / b_f


# ------------------------- pure-JAX reference ------------------------------
def _kl_loss_ref(logits, soft_labels, multi_task,
                 soft_logits=None, labels=None, class_weights=None):
    def log_softmax(x):
        return x - jax.scipy.special.logsumexp(x, axis=-1, keepdims=True)

    B = logits.shape[0]
    preds = log_softmax(soft_logits if multi_task else logits)
    kl = jnp.where(soft_labels > 0,
                   soft_labels * (jnp.log(jnp.where(soft_labels > 0,
                                                    soft_labels, 1.0)) - preds),
                   0.0)
    if multi_task:
        if class_weights is not None:
            hard = jnp.argmax(soft_labels, -1)
            w = class_weights[hard]
            kld = jnp.mean(jnp.sum(w[:, None] * kl, -1))
            logp = log_softmax(logits)
            nll = -jnp.take_along_axis(logp, labels[:, None], -1)[:, 0]
            wl = class_weights[labels]
            ce = jnp.sum(wl * nll) / jnp.sum(wl)
        else:
            kld = jnp.sum(kl) / B
            logp = log_softmax(logits)
            nll = -jnp.take_along_axis(logp, labels[:, None], -1)[:, 0]
            ce = jnp.mean(nll)
        return ce + kld
    else:
        if class_weights is not None:
            hard = jnp.argmax(soft_labels, -1)
            w = class_weights[hard]
            return jnp.sum(w[:, None] * kl) / B
        return jnp.sum(kl) / B


if __name__ == "__main__":
    key = jax.random.PRNGKey(0)
    B, C = 8, 32
    k1, k2, k3, k4, k5 = jax.random.split(key, 5)

    logits = jax.random.normal(k1, (B, C), jnp.float32)
    soft_logits = jax.random.normal(k2, (B, C), jnp.float32)
    soft_labels = jax.nn.softmax(2.0 * jax.random.normal(k3, (B, C), jnp.float32), -1)
    labels = jax.random.randint(k4, (B,), 0, C, jnp.int32)
    class_weights = jax.random.uniform(k5, (C,), jnp.float32, 0.5, 2.0)

    ok = True
    cases = [
        dict(multi_task=False),
        dict(multi_task=False, class_weights=class_weights),
        dict(multi_task=True, soft_logits=soft_logits, labels=labels),
        dict(multi_task=True, soft_logits=soft_logits, labels=labels,
             class_weights=class_weights),
    ]
    for kw in cases:
        out = kl_loss(logits, soft_labels, **kw)
        jax.block_until_ready(out)
        ref = _kl_loss_ref(logits, soft_labels, **kw)
        if not jnp.allclose(out, ref, rtol=1e-5, atol=1e-5):
            ok = False

    # Exercise the multi-tile + ragged-tail path (B not a multiple of TB).
    B2, C2 = 40, 128
    j1, j2, j3, j4, j5 = jax.random.split(jax.random.PRNGKey(1), 5)
    logits2 = jax.random.normal(j1, (B2, C2), jnp.float32)
    soft_logits2 = jax.random.normal(j2, (B2, C2), jnp.float32)
    soft_labels2 = jax.nn.softmax(2.0 * jax.random.normal(j3, (B2, C2), jnp.float32), -1)
    labels_b2 = jax.random.randint(j4, (B2,), 0, C2, jnp.int32)
    cw2 = jax.random.uniform(j5, (C2,), jnp.float32, 0.5, 2.0)
    tiled_cases = [
        dict(multi_task=False, class_weights=cw2),
        dict(multi_task=True, soft_logits=soft_logits2, labels=labels_b2,
             class_weights=cw2),
    ]
    for kw in tiled_cases:
        out = kl_loss(logits2, soft_labels2, tile_rows=16, **kw)
        jax.block_until_ready(out)
        ref = _kl_loss_ref(logits2, soft_labels2, **kw)
        if not jnp.allclose(out, ref, rtol=1e-5, atol=1e-5):
            ok = False

    # Exercise bf16 streamed inputs (packed-dtype tiling path); sanity only.
    out_bf16 = kl_loss(logits.astype(jnp.bfloat16),
                       soft_labels.astype(jnp.bfloat16),
                       multi_task=True,
                       soft_logits=soft_logits.astype(jnp.bfloat16),
                       labels=labels, class_weights=class_weights)
    jax.block_until_ready(out_bf16)
    if not bool(jnp.isfinite(out_bf16)):
        ok = False

    if ok:
        print("KERNEL_OK")
    else:
        print("MISMATCH")
</pallas_src>

<mosaic_0001>
module attributes {stable_mosaic.version = 11 : i64} {
  func.func @kernel(%arg0: i32, %arg1: memref<8x32xf32, #tpu.memory_space<vmem>>, %arg2: memref<8x32xf32, #tpu.memory_space<vmem>>, %arg3: memref<1x8x128xf32, #tpu.memory_space<vmem>>) attributes {dimension_semantics = [#tpu.dimension_semantics<parallel>], iteration_bounds = array<i64: 1>, scalar_prefetch = 0 : i64, scratch_operands = 0 : i64, tpu.core_type = #tpu.core_type<tc>, window_params = [{transform_indices = @transform_0, window_bounds = array<i64: 8, 32>}, {transform_indices = @transform_1, window_bounds = array<i64: 8, 32>}, {transform_indices = @transform_2, window_bounds = array<i64: 1, 8, 128>}]} {
    %c8_i32 = arith.constant 8 : i32
    %0 = arith.muli %arg0, %c8_i32 : i32
    %1 = tpu.iota {dimensions = array<i32: 0>} : vector<8x1xi32>
    %2 = vector.broadcast %0 : i32 to vector<8x1xi32>
    %3 = arith.addi %2, %1 : vector<8x1xi32>
    %c8_i32_0 = arith.constant 8 : i32
    %4 = vector.broadcast %c8_i32_0 : i32 to vector<8x1xi32>
    %5 = arith.cmpi slt, %3, %4 : vector<8x1xi32>
    %c0 = arith.constant 0 : index
    %c0_1 = arith.constant 0 : index
    %6 = vector.load %arg2[%c0, %c0_1] : memref<8x32xf32, #tpu.memory_space<vmem>>, vector<8x32xf32>
    %c0_2 = arith.constant 0 : index
    %c0_3 = arith.constant 0 : index
    %7 = vector.load %arg1[%c0_2, %c0_3] : memref<8x32xf32, #tpu.memory_space<vmem>>, vector<8x32xf32>
    %cst = arith.constant dense<0xFF800000> : vector<8xf32>
    %8 = vector.multi_reduction <maximumf>, %7, %cst [1] : vector<8x32xf32> to vector<8xf32>
    %9 = vector.shape_cast %8 : vector<8xf32> to vector<8x1xf32>
    %10 = vector.broadcast %9 : vector<8x1xf32> to vector<8x32xf32>
    %11 = arith.subf %7, %10 : vector<8x32xf32>
    %12 = math.exp %11 : vector<8x32xf32>
    %cst_4 = arith.constant dense<0.000000e+00> : vector<8xf32>
    %13 = vector.multi_reduction <add>, %12, %cst_4 [1] : vector<8x32xf32> to vector<8xf32>
    %14 = vector.shape_cast %13 : vector<8xf32> to vector<8x1xf32>
    %15 = math.log %14 : vector<8x1xf32>
    %16 = vector.broadcast %15 : vector<8x1xf32> to vector<8x32xf32>
    %17 = arith.subf %11, %16 : vector<8x32xf32>
    %cst_5 = arith.constant 0.000000e+00 : f32
    %18 = vector.broadcast %cst_5 : f32 to vector<8x32xf32>
    %19 = arith.cmpf ogt, %6, %18 : vector<8x32xf32>
    %cst_6 = arith.constant 1.000000e+00 : f32
    %20 = vector.broadcast %cst_6 : f32 to vector<8x32xf32>
    %21 = arith.select %19, %6, %20 : vector<8x32xi1>, vector<8x32xf32>
    %22 = math.log %21 : vector<8x32xf32>
    %23 = arith.subf %22, %17 : vector<8x32xf32>
    %24 = arith.mulf %6, %23 : vector<8x32xf32>
    %cst_7 = arith.constant 0.000000e+00 : f32
    %25 = vector.broadcast %cst_7 : f32 to vector<8x32xf32>
    %26 = arith.select %19, %24, %25 : vector<8x32xi1>, vector<8x32xf32>
    %cst_8 = arith.constant dense<0.000000e+00> : vector<8xf32>
    %27 = vector.multi_reduction <add>, %26, %cst_8 [1] : vector<8x32xf32> to vector<8xf32>
    %28 = vector.shape_cast %27 : vector<8xf32> to vector<8x1xf32>
    %cst_9 = arith.constant 0.000000e+00 : f32
    %29 = vector.broadcast %cst_9 : f32 to vector<8x1xf32>
    %30 = arith.select %5, %28, %29 : vector<8x1xi1>, vector<8x1xf32>
    %cst_10 = arith.constant dense<0.000000e+00> : vector<1xf32>
    %31 = vector.multi_reduction <add>, %30, %cst_10 [0] : vector<8x1xf32> to vector<1xf32>
    %32 = vector.shape_cast %31 : vector<1xf32> to vector<1x1xf32>
    %33 = tpu.iota {dimensions = array<i32: 1>} : vector<8x128xi32>
    %c0_i32 = arith.constant 0 : i32
    %34 = vector.broadcast %c0_i32 : i32 to vector<8x128xi32>
    %35 = arith.cmpi eq, %33, %34 : vector<8x128xi32>
    %cst_11 = arith.constant 0.000000e+00 : f32
    %36 = vector.shape_cast %32 : vector<1x1xf32> to vector<1x1xf32>
    %37 = vector.broadcast %36 : vector<1x1xf32> to vector<8x128xf32>
    %38 = vector.broadcast %cst_11 : f32 to vector<8x128xf32>
    %39 = arith.select %35, %37, %38 : vector<8x128xi1>, vector<8x128xf32>
    %c0_12 = arith.constant 0 : index
    %c0_13 = arith.constant 0 : index
    %c0_14 = arith.constant 0 : index
    %40 = vector.load %arg3[%c0_12, %c0_13, %c0_14] : memref<1x8x128xf32, #tpu.memory_space<vmem>>, vector<1x8x128xf32>
    %41 = vector.shape_cast %40 : vector<1x8x128xf32> to vector<8x128xf32>
    %42 = vector.shape_cast %39 : vector<8x128xf32> to vector<1x8x128xf32>
    tpu.vector_store %arg3[%c0_12, %c0_13, %c0_14], %42 {strides = array<i32>} : memref<1x8x128xf32, #tpu.memory_space<vmem>>, vector<1x8x128xf32>,
    return
  }
  func.func @transform_0(%arg0: i32) -> (i32, i32) {
    %c0_i32 = arith.constant 0 : i32
    %c0_i32_0 = arith.constant 0 : i32
    return %arg0, %c0_i32 : i32, i32
  }
  func.func @transform_1(%arg0: i32) -> (i32, i32) {
    %c0_i32 = arith.constant 0 : i32
    %c0_i32_0 = arith.constant 0 : i32
    return %arg0, %c0_i32 : i32, i32
  }
  func.func @transform_2(%arg0: i32) -> (i32, i32, i32) {
    %c0_i32 = arith.constant 0 : i32
    %c0_i32_0 = arith.constant 0 : i32
    %c0_i32_1 = arith.constant 0 : i32
    return %arg0, %c0_i32, %c0_i32_0 : i32, i32, i32
  }
}

</mosaic_0001>

<llo_original>
// kernel: tpu_custom_call.1
$region0: #{tpu_custom_call.1}
  #allocation0 [shape = 'u32[]', space=smem, size = 0x4, offset = 0x4, fixed_abs, tag = 'smem constant byte address 0x4 - core index']
  #allocation1 [shape = 'u32[72,128]{1,0:T(1,128)}', space=vmem, size = 0x9000, scoped, tag = 'internal scratch']
  %s0 = inlined_call_operand.hbm [shape: f32[8,32], index: 0, kind: input, shape index: {}]
  %s1 = inlined_call_operand.hbm [shape: f32[8,32], index: 1, kind: input, shape index: {}]
  %s2 = inlined_call_operand.hbm [shape: f32[1,8,128], index: 2, kind: output, shape index: {}]
  %s3 = sld [smem:[#allocation0]]
  $region26: #{tpu_custom_call.1} parent=0
    _
  %s5 = ssub.s32 1, %s3
  %s6 = scalar_select 0, %s5, %s3
  $region1: #{tpu_custom_call.1} parent=0
    #allocation2 [shape = 'u8[4096]{0}', space=vmem, size = 0x1000, scoped, tag = 'input window, operand 0, single buffered']
    #allocation3 [shape = 's32[1]{0}', space=sflag, size = 0x4, scoped, tag = 'scoped memory for tpu_custom_call.1']
    #allocation4 [shape = 's32[1]{0}', space=sflag, size = 0x4, scoped, tag = 'scoped memory for tpu_custom_call.1']
    #allocation5 [shape = 'u8[4096]{0}', space=vmem, size = 0x1000, scoped, tag = 'input window, operand 1, single buffered']
    #allocation6 [shape = 's32[1]{0}', space=sflag, size = 0x4, scoped, tag = 'scoped memory for tpu_custom_call.1']
    #allocation7 [shape = 'u8[4096]{0}', space=vmem, size = 0x1000, scoped, tag = 'output window, operand 0, single buffered']
    %7 = vsyncpa [#allocation3], 0
    %8 = vsyncpa [#allocation6], 0
    %9 = vsyncpa [#allocation4], 0
    // Predicated region
    $region2: #{tpu_custom_call.1} parent=1 // pred_check
      _
    $region3: #{tpu_custom_call.1} parent=1 // pred_check_branch
      %11 = sbr.rel (0) target = $region5
    $region4: #{tpu_custom_call.1} parent=1 // pred_region
      %13 = vsyncadd [#allocation3], 0
      %s15 = sshll.u32 %s0, 4
      %s16 = int_to_ptr.hbm [resolvable:$true] %s15
      %s17 = sshll.u32 [#allocation2], 4
      %s18 = int_to_ptr.vmem [resolvable:$true] %s17
      %20 = dma.hbm_to_vmem [thread:$0]  %s16, 128, %s18, [#allocation3]
    $region5: #{tpu_custom_call.1} parent=1 // pred_fallthru
      _
    // Predicated region
    $region6: #{tpu_custom_call.1} parent=1 // pred_check
      _
    $region7: #{tpu_custom_call.1} parent=1 // pred_check_branch
      %22 = sbr.rel (0) target = $region9
    $region8: #{tpu_custom_call.1} parent=1 // pred_region
      %24 = vsyncadd [#allocation6], 0
      %s26 = sshll.u32 %s1, 4
      %s27 = int_to_ptr.hbm [resolvable:$true] %s26
      %s28 = sshll.u32 [#allocation5], 4
      %s29 = int_to_ptr.vmem [resolvable:$true] %s28
      %31 = dma.hbm_to_vmem [thread:$0]  %s27, 128, %s29, [#allocation6]
    $region9: #{tpu_custom_call.1} parent=1 // pred_fallthru
      _
    // Predicated region
    $region10: #{tpu_custom_call.1} parent=1 // pred_check
      _
    $region11: #{tpu_custom_call.1} parent=1 // pred_check_branch
      %33 = sbr.rel (0) target = $region13
    $region12: #{tpu_custom_call.1} parent=1 // pred_region
      %35 = dma.done [#allocation3], 128
    $region13: #{tpu_custom_call.1} parent=1 // pred_fallthru
      _
    // Predicated region
    $region14: #{tpu_custom_call.1} parent=1 // pred_check
      _
    $region15: #{tpu_custom_call.1} parent=1 // pred_check_branch
      %37 = sbr.rel (0) target = $region17
    $region16: #{tpu_custom_call.1} parent=1 // pred_region
      %39 = dma.done [#allocation6], 128
    $region17: #{tpu_custom_call.1} parent=1 // pred_fallthru
      _
    %s40 = smul.u32 0, 8
    %v41 = vlaneseq
    %v42 = vshrl.u32 %v41, 7
    %v43 = vstv %s40
    %v44 = vadd.s32 %v43, %v42
    %vm45 = vcmp.lt.s32.totalorder %v44, 8
    %v46 = vld [vmem:[#allocation5] sm:$0xff]
    %v47 = vld [vmem:[#allocation2] sm:$0xff]
    %vm48 = vcmask 261120
    %v49 = vsel %vm48, %v47, -inf
    %50 = vmax.xlane.f32.xlu0 %v49
    %v51 = vpop.xlane.xlu0 %50
    %v52 = vsub.f32 %v47, %v51
    %v53 = vmul.f32 %v52, 1.442695
    %v54 = vpow.pop %v53
    %v55 = vsel %vm48, %v54, 0.0
    %56 = vadd.xlane.f32.xlu0 %v55
    %v57 = vpop.xlane.xlu0 %56
    %v58 = vlog2.pop %v57
    %v59 = vmul.f32 %v58, 0.6931472
    %v60 = vsub.f32 %v52, %v59
    %vm61 = vcmp.gt.f32.partialorder %v46, 0.0
    %v62 = vsel %vm61, %v46, 1.0
    %v63 = vlog2.pop %v62
    %v64 = vmul.f32 %v63, 0.6931472
    %v65 = vsub.f32 %v64, %v60
    %v66 = vmul.f32 %v46, %v65
    %v67 = vsel %vm61, %v66, 0.0
    %v68 = vsel %vm48, %v67, 0.0
    %69 = vadd.xlane.f32.xlu0 %v68
    %v70 = vpop.xlane.xlu0 %69
    %v71 = vsel %vm45, %v70, 0.0
    %v72 = vrot.slane %v71, 4
    %v73 = vadd.f32 %v71, %v72
    %v74 = vrot.slane %v73, 2
    %v75 = vadd.f32 %v73, %v74
    %v76 = vrot.slane %v75, 1
    %v77 = vadd.f32 %v75, %v76
    %v78 = vlaneseq
    %v79 = vand.u32 %v78, 127
    %vm80 = vcmp.eq.s32.totalorder %v79, 0
    %v81 = vsel %vm80, %v77, 0.0
    %82 = vst [vmem:[#allocation7] sm:$0xff] %v81
    // Predicated region
    $region18: #{tpu_custom_call.1} parent=1 // pred_check
      _
    $region19: #{tpu_custom_call.1} parent=1 // pred_check_branch
      %84 = sbr.rel (0) target = $region21
    $region20: #{tpu_custom_call.1} parent=1 // pred_region
      %86 = vsyncadd [#allocation4], 0
      %s88 = sshll.u32 [#allocation7], 4
      %s89 = int_to_ptr.vmem [resolvable:$true] %s88
      %s90 = sshll.u32 %s2, 4
      %s91 = int_to_ptr.hbm [resolvable:$true] %s90
      %93 = dma.vmem_to_hbm [thread:$0]  %s89, 128, %s91, [#allocation4]
    $region21: #{tpu_custom_call.1} parent=1 // pred_fallthru
      _
    // Predicated region
    $region22: #{tpu_custom_call.1} parent=1 // pred_check
      _
    $region23: #{tpu_custom_call.1} parent=1 // pred_check_branch
      %95 = sbr.rel (0) target = $region25
    $region24: #{tpu_custom_call.1} parent=1 // pred_region
      %97 = dma.done [#allocation4], 128
    $region25: #{tpu_custom_call.1} parent=1 // pred_fallthru
      _
    %98 = vsyncpa [#allocation3], 1
    %99 = vsyncpa [#allocation6], 1
    %100 = vsyncpa [#allocation4], 1

</llo_original>
